<compile_context>
chip_gen: v7x
topology: tpu7x:2x2x1
jax: 0.10.0
libtpu: 0.0.40
codegen_flags: <defaults>
</compile_context>

<pallas_src>
import functools
import math

import jax
import jax.numpy as jnp
from jax import lax
from jax.experimental import pallas as pl
from jax.experimental.pallas import tpu as pltpu


def _round_up(x: int, m: int) -> int:
    return ((x + m - 1) // m) * m


def _sublane_rows(dtype) -> int:
    # Sub-32-bit dtypes pack along sublanes: f32 vreg is [8,128], bf16 [16,128], i8 [32,128].
    itemsize = jnp.dtype(dtype).itemsize
    return max(8, 32 // max(1, itemsize))


def _tensorcores_per_chip() -> int:
    """1 on v5e/v6e (single TensorCore), 2 on v4/v5p/v7x."""
    try:
        kind = jax.devices()[0].device_kind.lower()
    except Exception:
        return 1
    if any(m in kind for m in ("v5e", "v5 lite", "v5lite", "v6e", "v6 lite", "v6lite")):
        return 1
    if any(m in kind for m in ("v4", "v5p", "v7")):
        return 2
    return 1


def _gelu_exact(x):
    # torch.nn.GELU() default = exact (erf-based) GELU; keep in f32 (mandatory on v5e).
    return 0.5 * x * (1.0 + lax.erf(x * (1.0 / math.sqrt(2.0))))


def _gelu_tanh(x):
    # tanh approximation -> EUP slot (effectively free next to the MXU/VALU work).
    c = math.sqrt(2.0 / math.pi)
    return 0.5 * x * (1.0 + jnp.tanh(c * (x + 0.044715 * x * x * x)))


def _joint_policy_kernel(s_ref, t_ref, w1a_ref, w1b_ref, b1_ref,
                         w2_ref, b2_ref, w3_ref, b3_ref, o_ref, *, approx_gelu):
    gelu = _gelu_tanh if approx_gelu else _gelu_exact

    # Layer 1, concat fused:  concat([s, t], -1) @ W1  ==  s @ W1a + t @ W1b.
    # Operands feed the MXU in their native dtype; accumulation is f32.
    h = (jnp.dot(s_ref[...], w1a_ref[...], preferred_element_type=jnp.float32)
         + jnp.dot(t_ref[...], w1b_ref[...], preferred_element_type=jnp.float32)
         + b1_ref[...].astype(jnp.float32))
    h = gelu(h)

    # Layer 2.
    h = (jnp.dot(h.astype(w2_ref.dtype), w2_ref[...],
                 preferred_element_type=jnp.float32)
         + b2_ref[...].astype(jnp.float32))
    h = gelu(h)

    # Layer 3 (no activation).
    y = (jnp.dot(h.astype(w3_ref.dtype), w3_ref[...],
                 preferred_element_type=jnp.float32)
         + b3_ref[...].astype(jnp.float32))
    o_ref[...] = y.astype(o_ref.dtype)


def joint_policy_forward(s, t, params, *, tile_b=None, approx_gelu=False,
                         single_buffer_weights=None, max_tile_b=1024):
    """Pallas implementation of JointPolicy.forward(s, t).

    params = (W1, b1, W2, b2, W3, b3) with W stored [in_features, out_features] and
    b stored [1, out_features] (transpose torch weights when importing).
    approx_gelu=False keeps exact erf GELU (torch parity); True uses tanh-approx (EUP).
    """
    w1, b1, w2, b2, w3, b3 = params
    B, s_feat = s.shape
    t_feat = t.shape[1]
    hidden = w1.shape[1]
    out_dim = w3.shape[1]
    assert w1.shape[0] == s_feat + t_feat, "W1 rows must equal s_emb_dim + t_dim"

    # Fuse the concat: split W1 along its input dimension.
    w1a = w1[:s_feat]
    w1b = w1[s_feat:]

    # Biases as (1, dim) rows so they broadcast over the batch tile in VMEM.
    b1 = b1.reshape(1, -1)
    b2 = b2.reshape(1, -1)
    b3 = b3.reshape(1, -1)

    # Promotion rule: inputs AND weights participate (bf16 acts x f32 weights -> f32).
    out_dtype = jnp.result_type(s.dtype, t.dtype, w1.dtype)

    # --- batch tile selection (TC-count aware, sublane-packed, no wrapper padding) ---
    sub = _sublane_rows(s.dtype)
    if tile_b is None:
        if _tensorcores_per_chip() >= 2 and B > sub:
            # 2 TensorCores: ~2 equal grid steps so ("parallel",) shards across cores.
            tile_b = min(max_tile_b, _round_up(pl.cdiv(B, 2), sub))
        else:
            # Single TC: one grid step whenever the whole batch tile fits.
            tile_b = min(max_tile_b, _round_up(B, sub))
    tile_b = max(sub, _round_up(int(tile_b), sub))
    grid_b = pl.cdiv(B, tile_b)   # ragged last block handled by Pallas (masked writes)

    # --- resident weights: single-buffer once their footprint is the dominant term ---
    weight_bytes = sum(int(a.size) * jnp.dtype(a.dtype).itemsize
                       for a in (w1a, w1b, b1, w2, b2, w3, b3))
    if single_buffer_weights is None:
        single_buffer_weights = weight_bytes > (4 << 20)   # double-buffering >8 MiB: not worth it

    def _resident(shape):
        # Constant index_map -> stays in VMEM across all grid steps.
        if single_buffer_weights:
            return pl.BlockSpec(shape, lambda i: (0, 0), pipeline_mode=pl.Buffered(1))
        return pl.BlockSpec(shape, lambda i: (0, 0))

    # --- explicit VMEM budget (portable: clamp to v7x's 64 MiB physical per TC) ---
    itemsize_in = jnp.dtype(s.dtype).itemsize
    io_bytes = 2 * tile_b * ((s_feat + t_feat) * itemsize_in
                             + out_dim * jnp.dtype(out_dtype).itemsize)   # double-buffered I/O
    act_bytes = 4 * tile_b * hidden * 4                                   # f32 intermediates (generous)
    needed = (1 if single_buffer_weights else 2) * weight_bytes + io_bytes + act_bytes
    vmem_limit = int(min(64 << 20, max(32 << 20, 2 * needed)))

    out = pl.pallas_call(
        functools.partial(_joint_policy_kernel, approx_gelu=approx_gelu),
        out_shape=jax.ShapeDtypeStruct((B, out_dim), out_dtype),
        grid=(grid_b,),
        in_specs=[
            pl.BlockSpec((tile_b, s_feat), lambda i: (i, 0)),   # s tile
            pl.BlockSpec((tile_b, t_feat), lambda i: (i, 0)),   # t tile
            _resident((s_feat, hidden)),                        # W1a (resident)
            _resident((t_feat, hidden)),                        # W1b (resident)
            _resident((1, hidden)),                             # b1
            _resident((hidden, hidden)),                        # W2
            _resident((1, hidden)),                             # b2
            _resident((hidden, out_dim)),                       # W3
            _resident((1, out_dim)),                            # b3
        ],
        # out_dim-wide block on purpose (output is the smallest tensor; see header).
        out_specs=pl.BlockSpec((tile_b, out_dim), lambda i: (i, 0)),
        compiler_params=pltpu.CompilerParams(
            dimension_semantics=("parallel",),
            vmem_limit_bytes=vmem_limit,
        ),
    )(s, t, w1a, w1b, b1, w2, b2, w3, b3)

    return out


def init_joint_policy_params(key, s_dim, s_emb_dim, t_dim, hidden_dim=64,
                             out_dim=None, zero_init=False, dtype=jnp.float32):
    """PyTorch nn.Linear-style init: U[-1/sqrt(fan_in), +1/sqrt(fan_in)]."""
    if out_dim is None:
        out_dim = 2 * s_dim
    in_dim = s_emb_dim + t_dim
    dims = [(in_dim, hidden_dim), (hidden_dim, hidden_dim), (hidden_dim, out_dim)]
    params = []
    keys = jax.random.split(key, 6)
    for li, (fan_in, fan_out) in enumerate(dims):
        bound = 1.0 / math.sqrt(fan_in)
        w = jax.random.uniform(keys[2 * li], (fan_in, fan_out), dtype,
                               minval=-bound, maxval=bound)
        b = jax.random.uniform(keys[2 * li + 1], (1, fan_out), dtype,
                               minval=-bound, maxval=bound)
        if zero_init and li == len(dims) - 1:
            w = jnp.zeros_like(w)
            b = jnp.zeros_like(b)
        params += [w, b]
    return tuple(params)


def _reference_forward(s, t, params, approx_gelu=False):
    w1, b1, w2, b2, w3, b3 = params
    gelu = _gelu_tanh if approx_gelu else _gelu_exact
    x = jnp.concatenate([s, t], axis=-1)
    h = gelu(x @ w1 + b1.reshape(1, -1))
    h = gelu(h @ w2 + b2.reshape(1, -1))
    return h @ w3 + b3.reshape(1, -1)


if __name__ == "__main__":
    # Small shapes consistent with the module.
    B = 8
    s_dim = 8            # -> out_dim = 2 * s_dim = 16
    s_emb_dim = 24
    t_dim = 8
    hidden_dim = 32

    key = jax.random.PRNGKey(0)
    k_s, k_t, k_p = jax.random.split(key, 3)
    s = jax.random.normal(k_s, (B, s_emb_dim), jnp.float32)
    t = jax.random.normal(k_t, (B, t_dim), jnp.float32)
    params = init_joint_policy_params(k_p, s_dim, s_emb_dim, t_dim, hidden_dim)

    # Exact-GELU path (torch.nn.GELU() parity), auto tile policy.
    out = joint_policy_forward(s, t, params)
    jax.block_until_ready(out)
    ref = _reference_forward(s, t, params)
    assert out.shape == (B, 2 * s_dim)
    assert jnp.allclose(out, ref, atol=1e-5, rtol=1e-5)

    # Ragged batch with an explicit multi-step grid (B=20, tile=16 -> grid=(2,)):
    # exercises the no-pad path, the masked last block, and cross-step independence.
    B2 = 20
    s2 = jax.random.normal(jax.random.PRNGKey(1), (B2, s_emb_dim), jnp.float32)
    t2 = jax.random.normal(jax.random.PRNGKey(2), (B2, t_dim), jnp.float32)
    out2 = joint_policy_forward(s2, t2, params, tile_b=16)
    jax.block_until_ready(out2)
    ref2 = _reference_forward(s2, t2, params)
    assert out2.shape == (B2, 2 * s_dim)
    assert jnp.allclose(out2, ref2, atol=1e-5, rtol=1e-5)

    # Opt-in tanh-approx GELU (EUP path for v6e/v7x; intentionally not torch-bit-exact).
    out3 = joint_policy_forward(s2, t2, params, tile_b=16, approx_gelu=True)
    jax.block_until_ready(out3)
    ref3 = _reference_forward(s2, t2, params, approx_gelu=True)
    assert jnp.allclose(out3, ref3, atol=1e-3, rtol=1e-3)

    print("KERNEL_OK")
</pallas_src>

<mosaic_0001>
module attributes {stable_mosaic.version = 11 : i64} {
  func.func @_joint_policy_kernel(%arg0: i32, %arg1: memref<8x24xf32, #tpu.memory_space<vmem>>, %arg2: memref<8x8xf32, #tpu.memory_space<vmem>>, %arg3: memref<24x32xf32, #tpu.memory_space<vmem>>, %arg4: memref<8x32xf32, #tpu.memory_space<vmem>>, %arg5: memref<1x32xf32, #tpu.memory_space<vmem>>, %arg6: memref<32x32xf32, #tpu.memory_space<vmem>>, %arg7: memref<1x32xf32, #tpu.memory_space<vmem>>, %arg8: memref<32x16xf32, #tpu.memory_space<vmem>>, %arg9: memref<1x16xf32, #tpu.memory_space<vmem>>, %arg10: memref<8x16xf32, #tpu.memory_space<vmem>>) attributes {dimension_semantics = [#tpu.dimension_semantics<parallel>], iteration_bounds = array<i64: 1>, scalar_prefetch = 0 : i64, scratch_operands = 0 : i64, tpu.core_type = #tpu.core_type<tc>, window_params = [{transform_indices = @transform_0, window_bounds = array<i64: 8, 24>}, {transform_indices = @transform_1, window_bounds = array<i64: 8, 8>}, {pipeline_mode = #tpu.pipeline_mode<synchronous>, transform_indices = @transform_2, window_bounds = array<i64: 24, 32>}, {pipeline_mode = #tpu.pipeline_mode<synchronous>, transform_indices = @transform_3, window_bounds = array<i64: 8, 32>}, {pipeline_mode = #tpu.pipeline_mode<synchronous>, transform_indices = @transform_4, window_bounds = array<i64: 1, 32>}, {pipeline_mode = #tpu.pipeline_mode<synchronous>, transform_indices = @transform_5, window_bounds = array<i64: 32, 32>}, {pipeline_mode = #tpu.pipeline_mode<synchronous>, transform_indices = @transform_6, window_bounds = array<i64: 1, 32>}, {pipeline_mode = #tpu.pipeline_mode<synchronous>, transform_indices = @transform_7, window_bounds = array<i64: 32, 16>}, {pipeline_mode = #tpu.pipeline_mode<synchronous>, transform_indices = @transform_8, window_bounds = array<i64: 1, 16>}, {transform_indices = @transform_9, window_bounds = array<i64: 8, 16>}]} {
    %c0 = arith.constant 0 : index
    %c0_0 = arith.constant 0 : index
    %0 = vector.load %arg1[%c0, %c0_0] : memref<8x24xf32, #tpu.memory_space<vmem>>, vector<8x24xf32>
    %c0_1 = arith.constant 0 : index
    %c0_2 = arith.constant 0 : index
    %1 = vector.load %arg3[%c0_1, %c0_2] : memref<24x32xf32, #tpu.memory_space<vmem>>, vector<24x32xf32>
    %cst = arith.constant dense<0.000000e+00> : vector<8x32xf32>
    %2 = tpu.matmul %0, %1, %cst {dimension_numbers = #tpu.dot_dimension_numbers<[1], [0], [0], [1], [0, 0, 1, 1], [], []>} : vector<8x24xf32>, vector<24x32xf32>, vector<8x32xf32> -> vector<8x32xf32>
    %c0_3 = arith.constant 0 : index
    %c0_4 = arith.constant 0 : index
    %3 = vector.load %arg2[%c0_3, %c0_4] : memref<8x8xf32, #tpu.memory_space<vmem>>, vector<8x8xf32>
    %c0_5 = arith.constant 0 : index
    %c0_6 = arith.constant 0 : index
    %4 = vector.load %arg4[%c0_5, %c0_6] : memref<8x32xf32, #tpu.memory_space<vmem>>, vector<8x32xf32>
    %cst_7 = arith.constant dense<0.000000e+00> : vector<8x32xf32>
    %5 = tpu.matmul %3, %4, %cst_7 {dimension_numbers = #tpu.dot_dimension_numbers<[1], [0], [0], [1], [0, 0, 1, 1], [], []>} : vector<8x8xf32>, vector<8x32xf32>, vector<8x32xf32> -> vector<8x32xf32>
    %6 = arith.addf %2, %5 : vector<8x32xf32>
    %c0_8 = arith.constant 0 : index
    %c0_9 = arith.constant 0 : index
    %7 = vector.load %arg5[%c0_8, %c0_9] : memref<1x32xf32, #tpu.memory_space<vmem>>, vector<1x32xf32>
    %8 = vector.broadcast %7 : vector<1x32xf32> to vector<8x32xf32>
    %9 = arith.addf %6, %8 : vector<8x32xf32>
    %cst_10 = arith.constant 5.000000e-01 : f32
    %10 = vector.broadcast %cst_10 : f32 to vector<8x32xf32>
    %11 = arith.mulf %10, %9 : vector<8x32xf32>
    %cst_11 = arith.constant 0.707106769 : f32
    %12 = vector.broadcast %cst_11 : f32 to vector<8x32xf32>
    %13 = arith.mulf %9, %12 : vector<8x32xf32>
    %14 = math.erf %13 : vector<8x32xf32>
    %cst_12 = arith.constant 1.000000e+00 : f32
    %15 = vector.broadcast %cst_12 : f32 to vector<8x32xf32>
    %16 = arith.addf %15, %14 : vector<8x32xf32>
    %17 = arith.mulf %11, %16 : vector<8x32xf32>
    %c0_13 = arith.constant 0 : index
    %c0_14 = arith.constant 0 : index
    %18 = vector.load %arg6[%c0_13, %c0_14] : memref<32x32xf32, #tpu.memory_space<vmem>>, vector<32x32xf32>
    %cst_15 = arith.constant dense<0.000000e+00> : vector<8x32xf32>
    %19 = tpu.matmul %17, %18, %cst_15 {dimension_numbers = #tpu.dot_dimension_numbers<[1], [0], [0], [1], [0, 0, 1, 1], [], []>} : vector<8x32xf32>, vector<32x32xf32>, vector<8x32xf32> -> vector<8x32xf32>
    %c0_16 = arith.constant 0 : index
    %c0_17 = arith.constant 0 : index
    %20 = vector.load %arg7[%c0_16, %c0_17] : memref<1x32xf32, #tpu.memory_space<vmem>>, vector<1x32xf32>
    %21 = vector.broadcast %20 : vector<1x32xf32> to vector<8x32xf32>
    %22 = arith.addf %19, %21 : vector<8x32xf32>
    %cst_18 = arith.constant 5.000000e-01 : f32
    %23 = vector.broadcast %cst_18 : f32 to vector<8x32xf32>
    %24 = arith.mulf %23, %22 : vector<8x32xf32>
    %cst_19 = arith.constant 0.707106769 : f32
    %25 = vector.broadcast %cst_19 : f32 to vector<8x32xf32>
    %26 = arith.mulf %22, %25 : vector<8x32xf32>
    %27 = math.erf %26 : vector<8x32xf32>
    %cst_20 = arith.constant 1.000000e+00 : f32
    %28 = vector.broadcast %cst_20 : f32 to vector<8x32xf32>
    %29 = arith.addf %28, %27 : vector<8x32xf32>
    %30 = arith.mulf %24, %29 : vector<8x32xf32>
    %c0_21 = arith.constant 0 : index
    %c0_22 = arith.constant 0 : index
    %31 = vector.load %arg8[%c0_21, %c0_22] : memref<32x16xf32, #tpu.memory_space<vmem>>, vector<32x16xf32>
    %cst_23 = arith.constant dense<0.000000e+00> : vector<8x16xf32>
    %32 = tpu.matmul %30, %31, %cst_23 {dimension_numbers = #tpu.dot_dimension_numbers<[1], [0], [0], [1], [0, 0, 1, 1], [], []>} : vector<8x32xf32>, vector<32x16xf32>, vector<8x16xf32> -> vector<8x16xf32>
    %c0_24 = arith.constant 0 : index
    %c0_25 = arith.constant 0 : index
    %33 = vector.load %arg9[%c0_24, %c0_25] : memref<1x16xf32, #tpu.memory_space<vmem>>, vector<1x16xf32>
    %34 = vector.broadcast %33 : vector<1x16xf32> to vector<8x16xf32>
    %35 = arith.addf %32, %34 : vector<8x16xf32>
    %c0_26 = arith.constant 0 : index
    %c0_27 = arith.constant 0 : index
    %36 = vector.load %arg10[%c0_26, %c0_27] : memref<8x16xf32, #tpu.memory_space<vmem>>, vector<8x16xf32>
    tpu.vector_store %arg10[%c0_26, %c0_27], %35 {strides = array<i32>} : memref<8x16xf32, #tpu.memory_space<vmem>>, vector<8x16xf32>,
    return
  }
  func.func @transform_0(%arg0: i32) -> (i32, i32) {
    %c0_i32 = arith.constant 0 : i32
    %c0_i32_0 = arith.constant 0 : i32
    return %arg0, %c0_i32 : i32, i32
  }
  func.func @transform_1(%arg0: i32) -> (i32, i32) {
    %c0_i32 = arith.constant 0 : i32
    %c0_i32_0 = arith.constant 0 : i32
    return %arg0, %c0_i32 : i32, i32
  }
  func.func @transform_2(%arg0: i32) -> (i32, i32) {
    %c0_i32 = arith.constant 0 : i32
    %c0_i32_0 = arith.constant 0 : i32
    %c0_i32_1 = arith.constant 0 : i32
    return %c0_i32, %c0_i32_0 : i32, i32
  }
  func.func @transform_3(%arg0: i32) -> (i32, i32) {
    %c0_i32 = arith.constant 0 : i32
    %c0_i32_0 = arith.constant 0 : i32
    %c0_i32_1 = arith.constant 0 : i32
    return %c0_i32, %c0_i32_0 : i32, i32
  }
  func.func @transform_4(%arg0: i32) -> (i32, i32) {
    %c0_i32 = arith.constant 0 : i32
    %c0_i32_0 = arith.constant 0 : i32
    %c0_i32_1 = arith.constant 0 : i32
    return %c0_i32, %c0_i32_0 : i32, i32
  }
  func.func @transform_5(%arg0: i32) -> (i32, i32) {
    %c0_i32 = arith.constant 0 : i32
    %c0_i32_0 = arith.constant 0 : i32
    %c0_i32_1 = arith.constant 0 : i32
    return %c0_i32, %c0_i32_0 : i32, i32
  }
  func.func @transform_6(%arg0: i32) -> (i32, i32) {
    %c0_i32 = arith.constant 0 : i32
    %c0_i32_0 = arith.constant 0 : i32
    %c0_i32_1 = arith.constant 0 : i32
    return %c0_i32, %c0_i32_0 : i32, i32
  }
  func.func @transform_7(%arg0: i32) -> (i32, i32) {
    %c0_i32 = arith.constant 0 : i32
    %c0_i32_0 = arith.constant 0 : i32
    %c0_i32_1 = arith.constant 0 : i32
    return %c0_i32, %c0_i32_0 : i32, i32
  }
  func.func @transform_8(%arg0: i32) -> (i32, i32) {
    %c0_i32 = arith.constant 0 : i32
    %c0_i32_0 = arith.constant 0 : i32
    %c0_i32_1 = arith.constant 0 : i32
    return %c0_i32, %c0_i32_0 : i32, i32
  }
  func.func @transform_9(%arg0: i32) -> (i32, i32) {
    %c0_i32 = arith.constant 0 : i32
    %c0_i32_0 = arith.constant 0 : i32
    return %arg0, %c0_i32 : i32, i32
  }
}

</mosaic_0001>

<llo_original>
// kernel: tpu_custom_call.1
$region0: #{tpu_custom_call.1}
  #allocation0 [shape = 'u32[]', space=smem, size = 0x4, offset = 0x4, fixed_abs, tag = 'smem constant byte address 0x4 - core index']
  #allocation1 [shape = 'u32[144,128]{1,0:T(1,128)}', space=vmem, size = 0x12000, scoped, tag = 'internal scratch']
  %s0 = inlined_call_operand.hbm [shape: f32[8,24], index: 0, kind: input, shape index: {}]
  %s1 = inlined_call_operand.hbm [shape: f32[8,8], index: 1, kind: input, shape index: {}]
  %s2 = inlined_call_operand.vmem [shape: f32[24,32], index: 2, kind: input, shape index: {}]
  %s3 = inlined_call_operand.hbm [shape: f32[8,32], index: 3, kind: input, shape index: {}]
  %s4 = inlined_call_operand.vmem [shape: f32[1,32], index: 4, kind: input, shape index: {}]
  %s5 = inlined_call_operand.vmem [shape: f32[32,32], index: 5, kind: input, shape index: {}]
  %s6 = inlined_call_operand.vmem [shape: f32[1,32], index: 6, kind: input, shape index: {}]
  %s7 = inlined_call_operand.vmem [shape: f32[32,16], index: 7, kind: input, shape index: {}]
  %s8 = inlined_call_operand.vmem [shape: f32[1,16], index: 8, kind: input, shape index: {}]
  %s9 = inlined_call_operand.hbm [shape: f32[8,16], index: 9, kind: output, shape index: {}]
  %s10 = sld [smem:[#allocation0]]
  $region58: #{tpu_custom_call.1} parent=0
    _
  %s12 = ssub.s32 1, %s10
  %s13 = scalar_select 0, %s12, %s10
  $region1: #{tpu_custom_call.1} parent=0
    #allocation2 [shape = 'u8[4096]{0}', space=vmem, size = 0x1000, scoped, tag = 'input window, operand 0, single buffered']
    #allocation3 [shape = 's32[1]{0}', space=sflag, size = 0x4, scoped, tag = 'scoped memory for tpu_custom_call.1']
    #allocation4 [shape = 's32[1]{0}', space=sflag, size = 0x4, scoped, tag = 'scoped memory for tpu_custom_call.1']
    #allocation5 [shape = 'u8[4096]{0}', space=vmem, size = 0x1000, scoped, tag = 'input window, operand 1, single buffered']
    #allocation6 [shape = 's32[1]{0}', space=sflag, size = 0x4, scoped, tag = 'scoped memory for tpu_custom_call.1']
    #allocation7 [shape = 'u8[4096]{0}', space=vmem, size = 0x1000, scoped, tag = 'input window, operand 3, single buffered']
    #allocation8 [shape = 'u8[4096]{0}', space=vmem, size = 0x1000, scoped, tag = 'output window, operand 0, single buffered']
    %14 = vsyncpa [#allocation3], 0
    %15 = vsyncpa [#allocation6], 0
    %16 = vsyncpa [#allocation4], 0
    // Predicated region
    $region2: #{tpu_custom_call.1} parent=1 // pred_check
      _
    $region3: #{tpu_custom_call.1} parent=1 // pred_check_branch
      %18 = sbr.rel (0) target = $region5
    $region4: #{tpu_custom_call.1} parent=1 // pred_region
      %s20 = ssub.s32 128, 128
      %21 = vsyncadd [#allocation3], %s20
      %s23 = sshll.u32 [#allocation2], 4
      %s24 = int_to_ptr.vmem [resolvable:$true] %s23
      %26 = dma.hbm_to_vmem [thread:$0]  %s0, 128, %s24, [#allocation3]
    $region5: #{tpu_custom_call.1} parent=1 // pred_fallthru
      _
    // Predicated region
    $region6: #{tpu_custom_call.1} parent=1 // pred_check
      _
    $region7: #{tpu_custom_call.1} parent=1 // pred_check_branch
      %28 = sbr.rel (0) target = $region9
    $region8: #{tpu_custom_call.1} parent=1 // pred_region
      %s30 = ssub.s32 128, 128
      %31 = vsyncadd [#allocation6], %s30
      %s33 = sshll.u32 [#allocation5], 4
      %s34 = int_to_ptr.vmem [resolvable:$true] %s33
      %36 = dma.hbm_to_vmem [thread:$0]  %s1, 128, %s34, [#allocation6]
    $region9: #{tpu_custom_call.1} parent=1 // pred_fallthru
      _
    // Predicated region
    $region10: #{tpu_custom_call.1} parent=1 // pred_check
      _
    $region11: #{tpu_custom_call.1} parent=1 // pred_check_branch
      %38 = sbr.rel (0) target = $region13
    $region12: #{tpu_custom_call.1} parent=1 // pred_region
      _
    $region13: #{tpu_custom_call.1} parent=1 // pred_fallthru
      _
    // Predicated region
    $region14: #{tpu_custom_call.1} parent=1 // pred_check
      _
    $region15: #{tpu_custom_call.1} parent=1 // pred_check_branch
      %40 = sbr.rel (0) target = $region17
    $region16: #{tpu_custom_call.1} parent=1 // pred_region
      %s42 = ssub.s32 128, 128
      %43 = vsyncadd [#allocation6], %s42
      %s45 = sshll.u32 [#allocation7], 4
      %s46 = int_to_ptr.vmem [resolvable:$true] %s45
      %48 = dma.hbm_to_vmem [thread:$0]  %s3, 128, %s46, [#allocation6]
    $region17: #{tpu_custom_call.1} parent=1 // pred_fallthru
      _
    // Predicated region
    $region18: #{tpu_custom_call.1} parent=1 // pred_check
      _
    $region19: #{tpu_custom_call.1} parent=1 // pred_check_branch
      %50 = sbr.rel (0) target = $region21
    $region20: #{tpu_custom_call.1} parent=1 // pred_region
      _
    $region21: #{tpu_custom_call.1} parent=1 // pred_fallthru
      _
    // Predicated region
    $region22: #{tpu_custom_call.1} parent=1 // pred_check
      _
    $region23: #{tpu_custom_call.1} parent=1 // pred_check_branch
      %52 = sbr.rel (0) target = $region25
    $region24: #{tpu_custom_call.1} parent=1 // pred_region
      _
    $region25: #{tpu_custom_call.1} parent=1 // pred_fallthru
      _
    // Predicated region
    $region26: #{tpu_custom_call.1} parent=1 // pred_check
      _
    $region27: #{tpu_custom_call.1} parent=1 // pred_check_branch
      %54 = sbr.rel (0) target = $region29
    $region28: #{tpu_custom_call.1} parent=1 // pred_region
      _
    $region29: #{tpu_custom_call.1} parent=1 // pred_fallthru
      _
    // Predicated region
    $region30: #{tpu_custom_call.1} parent=1 // pred_check
      _
    $region31: #{tpu_custom_call.1} parent=1 // pred_check_branch
      %56 = sbr.rel (0) target = $region33
    $region32: #{tpu_custom_call.1} parent=1 // pred_region
      _
    $region33: #{tpu_custom_call.1} parent=1 // pred_fallthru
      _
    // Predicated region
    $region34: #{tpu_custom_call.1} parent=1 // pred_check
      _
    $region35: #{tpu_custom_call.1} parent=1 // pred_check_branch
      %58 = sbr.rel (0) target = $region37
    $region36: #{tpu_custom_call.1} parent=1 // pred_region
      _
    $region37: #{tpu_custom_call.1} parent=1 // pred_fallthru
      _
    // Predicated region
    $region38: #{tpu_custom_call.1} parent=1 // pred_check
      _
    $region39: #{tpu_custom_call.1} parent=1 // pred_check_branch
      %60 = sbr.rel (0) target = $region41
    $region40: #{tpu_custom_call.1} parent=1 // pred_region
      %61 = dma.done [#allocation3], 128
    $region41: #{tpu_custom_call.1} parent=1 // pred_fallthru
      _
    // Predicated region
    $region42: #{tpu_custom_call.1} parent=1 // pred_check
      _
    $region43: #{tpu_custom_call.1} parent=1 // pred_check_branch
      %63 = sbr.rel (0) target = $region45
    $region44: #{tpu_custom_call.1} parent=1 // pred_region
      %64 = dma.done [#allocation6], 128
    $region45: #{tpu_custom_call.1} parent=1 // pred_fallthru
      _
    // Predicated region
    $region46: #{tpu_custom_call.1} parent=1 // pred_check
      _
    $region47: #{tpu_custom_call.1} parent=1 // pred_check_branch
      %66 = sbr.rel (0) target = $region49
    $region48: #{tpu_custom_call.1} parent=1 // pred_region
      %67 = dma.done [#allocation6], 128
    $region49: #{tpu_custom_call.1} parent=1 // pred_fallthru
      _
    %v68 = vld [vmem:[#allocation2] sm:$0xff]
    %v69 = vld [vmem:[%s2] sm:$0xff]
    %v70 = vld [vmem:[%s2 + $0x8] sm:$0xff]
    %v71 = vld [vmem:[%s2 + $0x10] sm:$0xff]
    %v72 = vld [vmem:[#allocation5] sm:$0xff]
    %v73 = vld [vmem:[#allocation7] sm:$0xff]
    %vm74 = vcmask 64512
    %v76 = vsel %vm74, %v72, 0
    %78 = vmatprep.subr.mxu0 0.0
    %79 = vmatpush1.msra.mxu0 %v73
    %80 = vmatprep.subr.mxu0 0.0
    %81 = vmatpush1.msra.mxu0 0.0
    %82 = vmatprep.subr.mxu0 0.0
    %83 = vmatpush1.msra.mxu0 0.0
    %84 = vmatprep.subr.mxu0 0.0
    %85 = vmatpush1.msra.mxu0 0.0
    %86 = vmatprep.subr.mxu0 0.0
    %87 = vmatpush1.msra.mxu0 0.0
    %88 = vmatprep.subr.mxu0 0.0
    %89 = vmatpush1.msra.mxu0 0.0
    %90 = vmatprep.subr.mxu0 0.0
    %91 = vmatpush1.msra.mxu0 0.0
    %92 = vmatprep.subr.mxu0 0.0
    %93 = vmatpush1.msra.mxu0 0.0
    %94 = vmatprep.subr.mxu0 0.0
    %95 = vmatpush1.msra.mxu0 0.0
    %96 = vmatprep.subr.mxu0 0.0
    %97 = vmatpush1.msra.mxu0 0.0
    %98 = vmatprep.subr.mxu0 0.0
    %99 = vmatpush1.msra.mxu0 0.0
    %100 = vmatprep.subr.mxu0 0.0
    %101 = vmatpush1.msra.mxu0 0.0
    %102 = vmatprep.subr.mxu0 0.0
    %103 = vmatpush1.msra.mxu0 0.0
    %104 = vmatprep.subr.mxu0 0.0
    %105 = vmatpush1.msra.mxu0 0.0
    %106 = vmatprep.subr.mxu0 0.0
    %107 = vmatpush1.msra.mxu0 0.0
    %108 = vmatprep.subr.mxu0 0.0
    %109 = vmatpush1.msra.mxu0 0.0
    %110 = vmatprep.subr.mxu0 0.0
    %111 = vmatpush1.msra.mxu0 0.0
    %112 = vmatprep.subr.mxu0 0.0
    %113 = vmatpush1.msra.mxu0 0.0
    %114 = vmatprep.subr.mxu0 0.0
    %115 = vmatpush1.msra.mxu0 0.0
    %116 = vmatprep.subr.mxu0 0.0
    %117 = vmatpush1.msra.mxu0 0.0
    %118 = vmatprep.subr.mxu0 0.0
    %119 = vmatpush1.msra.mxu0 0.0
    %120 = vmatprep.subr.mxu0 0.0
    %121 = vmatpush1.msra.mxu0 0.0
    %122 = vmatprep.subr.mxu0 0.0
    %123 = vmatpush1.msra.mxu0 0.0
    %124 = vmatprep.subr.mxu0 0.0
    %125 = vmatpush1.msra.mxu0 0.0
    %126 = vmatprep.subr.mxu0 0.0
    %127 = vmatpush1.msra.mxu0 0.0
    %128 = vmatprep.subr.mxu0 0.0
    %129 = vmatpush1.msra.mxu0 0.0
    %130 = vmatprep.subr.mxu0 0.0
    %131 = vmatpush1.msra.mxu0 0.0
    %132 = vmatprep.subr.mxu0 0.0
    %133 = vmatpush1.msra.mxu0 0.0
    %134 = vmatprep.subr.mxu0 0.0
    %135 = vmatpush1.msra.mxu0 0.0
    %136 = vmatprep.subr.mxu0 0.0
    %137 = vmatpush1.msra.mxu0 0.0
    %138 = vmatprep.subr.mxu0 0.0
    %139 = vmatpush1.msra.mxu0 0.0
    %140 = vmatprep.subr.mxu0 0.0
    %141 = vmatpush1.msra.mxu0 0.0
    %142 = vmatprep.mubr.f32.mxu0 0.0
    %143 = vmatmul.mubr.f32.gmra.mrb[0].mxu0 %v76
    %v144 = vpop.f32.mrb[0].mxu0
    %v145 = vadd.f32 0.0, %v144
    %v146 = vpop.f32.mrb[0].mxu0
    %147 = vdwg.mxu0
    %vm148 = vcmask 195584
    %v150 = vsel %vm148, %v68, 0
    %152 = vmatprep.subr.mxu0 0.0
    %153 = vmatpush1.msra.mxu0 %v69
    %154 = vmatprep.subr.mxu0 0.0
    %155 = vmatpush1.msra.mxu0 %v70
    %156 = vmatprep.subr.mxu0 0.0
    %157 = vmatpush1.msra.mxu0 %v71
    %158 = vmatprep.subr.mxu0 0.0
    %159 = vmatpush1.msra.mxu0 0.0
    %160 = vmatprep.subr.mxu0 0.0
    %161 = vmatpush1.msra.mxu0 0.0
    %162 = vmatprep.subr.mxu0 0.0
    %163 = vmatpush1.msra.mxu0 0.0
    %164 = vmatprep.subr.mxu0 0.0
    %165 = vmatpush1.msra.mxu0 0.0
    %166 = vmatprep.subr.mxu0 0.0
    %167 = vmatpush1.msra.mxu0 0.0
    %168 = vmatprep.subr.mxu0 0.0
    %169 = vmatpush1.msra.mxu0 0.0
    %170 = vmatprep.subr.mxu0 0.0
    %171 = vmatpush1.msra.mxu0 0.0
    %172 = vmatprep.subr.mxu0 0.0
    %173 = vmatpush1.msra.mxu0 0.0
    %174 = vmatprep.subr.mxu0 0.0
    %175 = vmatpush1.msra.mxu0 0.0
    %176 = vmatprep.subr.mxu0 0.0
    %177 = vmatpush1.msra.mxu0 0.0
    %178 = vmatprep.subr.mxu0 0.0
    %179 = vmatpush1.msra.mxu0 0.0
    %180 = vmatprep.subr.mxu0 0.0
    %181 = vmatpush1.msra.mxu0 0.0
    %182 = vmatprep.subr.mxu0 0.0
    %183 = vmatpush1.msra.mxu0 0.0
    %184 = vmatprep.subr.mxu0 0.0
    %185 = vmatpush1.msra.mxu0 0.0
    %186 = vmatprep.subr.mxu0 0.0
    %187 = vmatpush1.msra.mxu0 0.0
    %188 = vmatprep.subr.mxu0 0.0
    %189 = vmatpush1.msra.mxu0 0.0
    %190 = vmatprep.subr.mxu0 0.0
    %191 = vmatpush1.msra.mxu0 0.0
    %192 = vmatprep.subr.mxu0 0.0
    %193 = vmatpush1.msra.mxu0 0.0
    %194 = vmatprep.subr.mxu0 0.0
    %195 = vmatpush1.msra.mxu0 0.0
    %196 = vmatprep.subr.mxu0 0.0
    %197 = vmatpush1.msra.mxu0 0.0
    %198 = vmatprep.subr.mxu0 0.0
    %199 = vmatpush1.msra.mxu0 0.0
    %200 = vmatprep.subr.mxu0 0.0
    %201 = vmatpush1.msra.mxu0 0.0
    %202 = vmatprep.subr.mxu0 0.0
    %203 = vmatpush1.msra.mxu0 0.0
    %204 = vmatprep.subr.mxu0 0.0
    %205 = vmatpush1.msra.mxu0 0.0
    %206 = vmatprep.subr.mxu0 0.0
    %207 = vmatpush1.msra.mxu0 0.0
    %208 = vmatprep.subr.mxu0 0.0
    %209 = vmatpush1.msra.mxu0 0.0
    %210 = vmatprep.subr.mxu0 0.0
    %211 = vmatpush1.msra.mxu0 0.0
    %212 = vmatprep.subr.mxu0 0.0
    %213 = vmatpush1.msra.mxu0 0.0
    %214 = vmatprep.subr.mxu0 0.0
    %215 = vmatpush1.msra.mxu0 0.0
    %216 = vmatprep.mubr.f32.mxu0 0.0
    %217 = vmatmul.mubr.f32.gmra.mrb[0].mxu0 %v150
    %v218 = vpop.f32.mrb[0].mxu0
    %v219 = vadd.f32 %v145, %v218
    %v220 = vpop.f32.mrb[0].mxu0
    %221 = vdwg.mxu0
    %v222 = vld [vmem:[%s4] sm:$0x1]
    %v224 = vlaneseq
    %v225 = vshrl.u32 %v224, 7
    %v226 = vsub.s32 0, %v225
    %v227 = vrot.slane %v222, %v226
    %v229 = vadd.f32 %v219, %v227
    %v230 = vmul.f32 %v229, 0.5
    %v231 = vmul.f32 %v229, 0.70710677
    %v232 = verf.f32.pop %v231
    %v233 = vadd.f32 %v232, 1.0
    %v234 = vmul.f32 %v230, %v233
    %v235 = vld [vmem:[%s5] sm:$0xff]
    %v236 = vld [vmem:[%s5 + $0x8] sm:$0xff]
    %v237 = vld [vmem:[%s5 + $0x10] sm:$0xff]
    %v238 = vld [vmem:[%s5 + $0x18] sm:$0xff]
    %v239 = vld [vmem:[%s6] sm:$0x1]
    %v241 = vlaneseq
    %v242 = vshrl.u32 %v241, 7
    %v243 = vsub.s32 0, %v242
    %v244 = vrot.slane %v239, %v243
    %vm246 = vcmask 261120
    %v248 = vsel %vm246, %v234, 0
    %250 = vmatprep.subr.mxu0 0.0
    %251 = vmatpush1.msra.mxu0 %v235
    %252 = vmatprep.subr.mxu0 0.0
    %253 = vmatpush1.msra.mxu0 %v236
    %254 = vmatprep.subr.mxu0 0.0
    %255 = vmatpush1.msra.mxu0 %v237
    %256 = vmatprep.subr.mxu0 0.0
    %257 = vmatpush1.msra.mxu0 %v238
    %258 = vmatprep.subr.mxu0 0.0
    %259 = vmatpush1.msra.mxu0 0.0
    %260 = vmatprep.subr.mxu0 0.0
    %261 = vmatpush1.msra.mxu0 0.0
    %262 = vmatprep.subr.mxu0 0.0
    %263 = vmatpush1.msra.mxu0 0.0
    %264 = vmatprep.subr.mxu0 0.0
    %265 = vmatpush1.msra.mxu0 0.0
    %266 = vmatprep.subr.mxu0 0.0
    %267 = vmatpush1.msra.mxu0 0.0
    %268 = vmatprep.subr.mxu0 0.0
    %269 = vmatpush1.msra.mxu0 0.0
    %270 = vmatprep.subr.mxu0 0.0
    %271 = vmatpush1.msra.mxu0 0.0
    %272 = vmatprep.subr.mxu0 0.0
    %273 = vmatpush1.msra.mxu0 0.0
    %274 = vmatprep.subr.mxu0 0.0
    %275 = vmatpush1.msra.mxu0 0.0
    %276 = vmatprep.subr.mxu0 0.0
    %277 = vmatpush1.msra.mxu0 0.0
    %278 = vmatprep.subr.mxu0 0.0
    %279 = vmatpush1.msra.mxu0 0.0
    %280 = vmatprep.subr.mxu0 0.0
    %281 = vmatpush1.msra.mxu0 0.0
    %282 = vmatprep.subr.mxu0 0.0
    %283 = vmatpush1.msra.mxu0 0.0
    %284 = vmatprep.subr.mxu0 0.0
    %285 = vmatpush1.msra.mxu0 0.0
    %286 = vmatprep.subr.mxu0 0.0
    %287 = vmatpush1.msra.mxu0 0.0
    %288 = vmatprep.subr.mxu0 0.0
    %289 = vmatpush1.msra.mxu0 0.0
    %290 = vmatprep.subr.mxu0 0.0
    %291 = vmatpush1.msra.mxu0 0.0
    %292 = vmatprep.subr.mxu0 0.0
    %293 = vmatpush1.msra.mxu0 0.0
    %294 = vmatprep.subr.mxu0 0.0
    %295 = vmatpush1.msra.mxu0 0.0
    %296 = vmatprep.subr.mxu0 0.0
    %297 = vmatpush1.msra.mxu0 0.0
    %298 = vmatprep.subr.mxu0 0.0
    %299 = vmatpush1.msra.mxu0 0.0
    %300 = vmatprep.subr.mxu0 0.0
    %301 = vmatpush1.msra.mxu0 0.0
    %302 = vmatprep.subr.mxu0 0.0
    %303 = vmatpush1.msra.mxu0 0.0
    %304 = vmatprep.subr.mxu0 0.0
    %305 = vmatpush1.msra.mxu0 0.0
    %306 = vmatprep.subr.mxu0 0.0
    %307 = vmatpush1.msra.mxu0 0.0
    %308 = vmatprep.subr.mxu0 0.0
    %309 = vmatpush1.msra.mxu0 0.0
    %310 = vmatprep.subr.mxu0 0.0
    %311 = vmatpush1.msra.mxu0 0.0
    %312 = vmatprep.subr.mxu0 0.0
    %313 = vmatpush1.msra.mxu0 0.0
    %314 = vmatprep.mubr.f32.mxu0 0.0
    %315 = vmatmul.mubr.f32.gmra.mrb[0].mxu0 %v248
    %v316 = vpop.f32.mrb[0].mxu0
    %v317 = vadd.f32 %v244, %v316
    %v318 = vpop.f32.mrb[0].mxu0
    %319 = vdwg.mxu0
    %v320 = vmul.f32 %v317, 0.5
    %v321 = vmul.f32 %v317, 0.70710677
    %v322 = verf.f32.pop %v321
    %v323 = vadd.f32 %v322, 1.0
    %v324 = vmul.f32 %v320, %v323
    %v325 = vld [vmem:[%s7] sm:$0xff]
    %v326 = vld [vmem:[%s7 + $0x8] sm:$0xff]
    %v327 = vld [vmem:[%s7 + $0x10] sm:$0xff]
    %v328 = vld [vmem:[%s7 + $0x18] sm:$0xff]
    %v329 = vld [vmem:[%s8] sm:$0x1]
    %v331 = vlaneseq
    %v332 = vshrl.u32 %v331, 7
    %v333 = vsub.s32 0, %v332
    %v334 = vrot.slane %v329, %v333
    %v337 = vsel %vm246, %v324, 0
    %339 = vmatprep.subr.mxu0 0.0
    %340 = vmatpush1.msra.mxu0 %v325
    %341 = vmatprep.subr.mxu0 0.0
    %342 = vmatpush1.msra.mxu0 %v326
    %343 = vmatprep.subr.mxu0 0.0
    %344 = vmatpush1.msra.mxu0 %v327
    %345 = vmatprep.subr.mxu0 0.0
    %346 = vmatpush1.msra.mxu0 %v328
    %347 = vmatprep.subr.mxu0 0.0
    %348 = vmatpush1.msra.mxu0 0.0
    %349 = vmatprep.subr.mxu0 0.0
    %350 = vmatpush1.msra.mxu0 0.0
    %351 = vmatprep.subr.mxu0 0.0
    %352 = vmatpush1.msra.mxu0 0.0
    %353 = vmatprep.subr.mxu0 0.0
    %354 = vmatpush1.msra.mxu0 0.0
    %355 = vmatprep.subr.mxu0 0.0
    %356 = vmatpush1.msra.mxu0 0.0
    %357 = vmatprep.subr.mxu0 0.0
    %358 = vmatpush1.msra.mxu0 0.0
    %359 = vmatprep.subr.mxu0 0.0
    %360 = vmatpush1.msra.mxu0 0.0
    %361 = vmatprep.subr.mxu0 0.0
    %362 = vmatpush1.msra.mxu0 0.0
    %363 = vmatprep.subr.mxu0 0.0
    %364 = vmatpush1.msra.mxu0 0.0
    %365 = vmatprep.subr.mxu0 0.0
    %366 = vmatpush1.msra.mxu0 0.0
    %367 = vmatprep.subr.mxu0 0.0
    %368 = vmatpush1.msra.mxu0 0.0
    %369 = vmatprep.subr.mxu0 0.0
    %370 = vmatpush1.msra.mxu0 0.0
    %371 = vmatprep.subr.mxu0 0.0
    %372 = vmatpush1.msra.mxu0 0.0
    %373 = vmatprep.subr.mxu0 0.0
    %374 = vmatpush1.msra.mxu0 0.0
    %375 = vmatprep.subr.mxu0 0.0
    %376 = vmatpush1.msra.mxu0 0.0
    %377 = vmatprep.subr.mxu0 0.0
    %378 = vmatpush1.msra.mxu0 0.0
    %379 = vmatprep.subr.mxu0 0.0
    %380 = vmatpush1.msra.mxu0 0.0
    %381 = vmatprep.subr.mxu0 0.0
    %382 = vmatpush1.msra.mxu0 0.0
    %383 = vmatprep.subr.mxu0 0.0
    %384 = vmatpush1.msra.mxu0 0.0
    %385 = vmatprep.subr.mxu0 0.0
    %386 = vmatpush1.msra.mxu0 0.0
    %387 = vmatprep.subr.mxu0 0.0
    %388 = vmatpush1.msra.mxu0 0.0
    %389 = vmatprep.subr.mxu0 0.0
    %390 = vmatpush1.msra.mxu0 0.0
    %391 = vmatprep.subr.mxu0 0.0
    %392 = vmatpush1.msra.mxu0 0.0
    %393 = vmatprep.subr.mxu0 0.0
    %394 = vmatpush1.msra.mxu0 0.0
    %395 = vmatprep.subr.mxu0 0.0
    %396 = vmatpush1.msra.mxu0 0.0
    %397 = vmatprep.subr.mxu0 0.0
    %398 = vmatpush1.msra.mxu0 0.0
    %399 = vmatprep.subr.mxu0 0.0
    %400 = vmatpush1.msra.mxu0 0.0
    %401 = vmatprep.subr.mxu0 0.0
    %402 = vmatpush1.msra.mxu0 0.0
    %403 = vmatprep.mubr.f32.mxu0 0.0
    %404 = vmatmul.mubr.f32.gmra.mrb[0].mxu0 %v337
    %v405 = vpop.f32.mrb[0].mxu0
    %v406 = vadd.f32 %v334, %v405
    %v407 = vpop.f32.mrb[0].mxu0
    %408 = vdwg.mxu0
    %vm409 = vcmask 130048
    %410 = vst.msk [vmem:[#allocation8] sm:$0xff] %vm409, %v406
    // Predicated region
    $region50: #{tpu_custom_call.1} parent=1 // pred_check
      _
    $region51: #{tpu_custom_call.1} parent=1 // pred_check_branch
      %412 = sbr.rel (0) target = $region53
    $region52: #{tpu_custom_call.1} parent=1 // pred_region
      %s414 = ssub.s32 128, 128
      %415 = vsyncadd [#allocation4], %s414
      %s417 = sshll.u32 [#allocation8], 4
      %s418 = int_to_ptr.vmem [resolvable:$true] %s417
      %420 = dma.vmem_to_hbm [thread:$0]  %s418, 128, %s9, [#allocation4]
    $region53: #{tpu_custom_call.1} parent=1 // pred_fallthru
      _
    // Predicated region
    $region54: #{tpu_custom_call.1} parent=1 // pred_check
      _
    $region55: #{tpu_custom_call.1} parent=1 // pred_check_branch
      %422 = sbr.rel (0) target = $region57
    $region56: #{tpu_custom_call.1} parent=1 // pred_region
      %423 = dma.done [#allocation4], 128
    $region57: #{tpu_custom_call.1} parent=1 // pred_fallthru
      _
    %424 = vsyncpa [#allocation3], 1
    %425 = vsyncpa [#allocation6], 1
    %426 = vsyncpa [#allocation4], 1

</llo_original>
